<compile_context>
chip_gen: v7x
topology: tpu7x:2x2x1
jax: 0.10.0
libtpu: 0.0.40
codegen_flags: <defaults>
</compile_context>

<pallas_src>
import jax
import jax.numpy as jnp
import numpy as np
from jax.experimental import pallas as pl
from jax.experimental.pallas import tpu as pltpu


# ----------------------------------------------------------------------------- helpers
def _round_up(n, m):
    return ((n + m - 1) // m) * m


def _pad_axis(a, axis, new_size):
    pad = [(0, 0)] * a.ndim
    pad[axis] = (0, new_size - a.shape[axis])
    return jnp.pad(a, pad)


def _pick_tile_h(B, H, W, cin_p, cout_p, itemsize, target_steps=8,
                 vmem_budget=8 * 1024 * 1024):
    """Largest divisor of H whose per-step footprint fits the VMEM budget;
    prefer the largest one that also gives >= target_steps grid steps."""
    best_fitting = None
    for d in range(H, 0, -1):
        if H % d:
            continue
        fpad = _round_up((d + 4) * (W + 4), 128)
        # x block + im2col patches of both convs (compute dtype) + f32
        # temporaries / output block, conservatively double counted.
        foot = fpad * (itemsize * (2 * cin_p + 9 * cin_p + 9 * cout_p)
                       + 4 * (5 * cout_p))
        if foot > vmem_budget:
            continue
        if best_fitting is None:
            best_fitting = d
        if B * (H // d) >= target_steps:
            return d
    return best_fitting if best_fitting is not None else 1


# ----------------------------------------------------------------------------- kernel
def _make_kernel(shifts, has_proj):
    def kernel(*refs):
        if has_proj:
            (x_ref, w1_ref, s1_ref, t1_ref, w2_ref, s2_ref, t2_ref,
             mask_ref, wsk_ref, bsk_ref, o_ref) = refs
        else:
            (x_ref, w1_ref, s1_ref, t1_ref, w2_ref, s2_ref, t2_ref,
             mask_ref, o_ref) = refs

        x2d = x_ref[0, 0]            # (Cin_p, Fpad): channels on sublanes, spatial on lanes
        mask = mask_ref[0]           # (1, Fpad): 1 = inside image, 0 = padding/halo

        def conv3x3(z, w_ref):
            # im2col along K: nine lane-rolled copies (XLU) concatenated into a
            # (9*C, Fpad) operand, then a single MXU matmul with K = 9*C.
            taps = [z if sh == 0 else pltpu.roll(z, sh, axis=1) for sh in shifts]
            patches = jnp.concatenate(taps, axis=0)
            return jnp.dot(w_ref[...], patches,
                           preferred_element_type=jnp.float32)   # (Cout_p, Fpad)

        # conv1 -> folded BN1 -> ReLU; zero everything outside the image so the
        # second conv sees correct zero padding (and strip halos stay clean).
        o1 = jnp.maximum(conv3x3(x2d, w1_ref) * s1_ref[...] + t1_ref[...], 0.0)
        o1 = o1 * mask

        # conv2 -> folded BN2 (no ReLU yet)
        o2 = conv3x3(o1.astype(x2d.dtype), w2_ref) * s2_ref[...] + t2_ref[...]

        # skip path: 1x1 projection when Cin != Cout, plain add otherwise.
        if has_proj:
            skip = jnp.dot(wsk_ref[...], x2d,
                           preferred_element_type=jnp.float32) + bsk_ref[...]
        else:
            skip = x2d.astype(jnp.float32)

        o_ref[0, 0] = jnp.maximum(o2 + skip, 0.0).astype(o_ref.dtype)

    return kernel


# ----------------------------------------------------------------------------- wrapper
def residual_forward(x, params, *, eps=1e-5, compute_dtype=jnp.float32):
    """Eval-mode forward of the PyTorch `Residual` module.

    x      : (B, Cin, H, W) float32, NCHW (PyTorch layout).
    params : PyTorch-layout tensors:
       w1 (Cout,Cin,3,3), b1, g1, be1, m1, v1       # conv1 + bn1
       w2 (Cout,Cout,3,3), b2, g2, be2, m2, v2      # conv2 + bn2
       wsk (Cout,Cin,1,1), bsk (Cout,)              # only if Cin != Cout
    returns (B, Cout, H, W) float32.
    """
    B, Cin, H, W = x.shape
    Cout = params["w1"].shape[0]
    f32 = jnp.float32
    has_proj = params.get("wsk") is not None

    # channel padding so every sublane-dim block is a multiple of 8.
    Cin_p = _round_up(Cin, 8)
    Cout_p = _round_up(Cout, 8)

    # ---- fold eval-mode BatchNorm (+ conv bias) into per-channel scale/shift.
    s1 = (params["g1"] / jnp.sqrt(params["v1"] + eps)).astype(f32)
    t1 = (params["be1"] + s1 * (params["b1"] - params["m1"])).astype(f32)
    s2 = (params["g2"] / jnp.sqrt(params["v2"] + eps)).astype(f32)
    t2 = (params["be2"] + s2 * (params["b2"] - params["m2"])).astype(f32)
    s1p = _pad_axis(s1, 0, Cout_p).reshape(Cout_p, 1)
    t1p = _pad_axis(t1, 0, Cout_p).reshape(Cout_p, 1)
    s2p = _pad_axis(s2, 0, Cout_p).reshape(Cout_p, 1)
    t2p = _pad_axis(t2, 0, Cout_p).reshape(Cout_p, 1)

    # ---- weights in (Cout_p, 9*C_p) form; K index = (ky*3+kx)*C_p + c, which
    #      matches the in-kernel im2col tap order.
    w1_t = jnp.transpose(params["w1"], (0, 2, 3, 1))          # (Cout, 3, 3, Cin)
    w1_t = _pad_axis(_pad_axis(w1_t, 3, Cin_p), 0, Cout_p)
    w1_k = w1_t.reshape(Cout_p, 9 * Cin_p).astype(compute_dtype)
    w2_t = jnp.transpose(params["w2"], (0, 2, 3, 1))          # (Cout, 3, 3, Cout)
    w2_t = _pad_axis(_pad_axis(w2_t, 3, Cout_p), 0, Cout_p)
    w2_k = w2_t.reshape(Cout_p, 9 * Cout_p).astype(compute_dtype)

    # ---- row-strip tiling with a 2-row / 2-col halo (5x5 receptive field of
    #      the fused conv3x3∘conv3x3); strip frame is flattened onto lanes.
    itemsize = jnp.dtype(compute_dtype).itemsize
    TILE_H = _pick_tile_h(B, H, W, Cin_p, Cout_p, itemsize)
    n_strips = H // TILE_H
    R, Cc = TILE_H + 4, W + 4
    F = R * Cc
    Fpad = _round_up(F, 128)                 # lane-dense: multiple of 128

    # x_strips[b, s, c, r*Cc + col] = x[b, c, s*TILE_H + r - 2, col - 2] (0 outside)
    x_cp = _pad_axis(x.astype(compute_dtype), 1, Cin_p)       # (B, Cin_p, H, W)
    x_pad2 = jnp.pad(x_cp, ((0, 0), (0, 0), (2, 2), (2, 2)))  # (B, Cin_p, H+4, W+4)
    x_strips = jnp.stack(
        [x_pad2[:, :, s * TILE_H: s * TILE_H + R, :] for s in range(n_strips)],
        axis=1)                                               # (B, S, Cin_p, R, Cc)
    x_strips = x_strips.reshape(B, n_strips, Cin_p, F)
    x_strips = jnp.pad(x_strips, ((0, 0), (0, 0), (0, 0), (0, Fpad - F)))

    # per-strip "inside the image" masks (rows depend on the strip position).
    masks = np.zeros((n_strips, 1, Fpad), np.float32)
    for s in range(n_strips):
        r0 = s * TILE_H
        m = np.zeros((R, Cc), np.float32)
        rlo = max(1, 2 - r0)
        rhi = min(R - 2, H + 1 - r0)                          # inclusive
        m[rlo:rhi + 1, 2:W + 2] = 1.0
        masks[s, 0, :F] = m.reshape(-1)
    mask_arr = jnp.asarray(masks)

    # tap shifts in the flattened frame (row stride = Cc).  pltpu.roll follows
    # np.roll semantics; we need shifted[i] = x[i + s_t]  =>  shift = -s_t.
    shifts = tuple((-(ky - 1) * Cc - (kx - 1)) % Fpad
                   for ky in range(3) for kx in range(3))

    const = lambda b, s: (0, 0)
    in_specs = [
        pl.BlockSpec((1, 1, Cin_p, Fpad), lambda b, s: (b, s, 0, 0)),
        pl.BlockSpec((Cout_p, 9 * Cin_p), const),    # weights / BN vectors:
        pl.BlockSpec((Cout_p, 1), const),            # constant index maps ->
        pl.BlockSpec((Cout_p, 1), const),            # DMA'd once, VMEM resident
        pl.BlockSpec((Cout_p, 9 * Cout_p), const),
        pl.BlockSpec((Cout_p, 1), const),
        pl.BlockSpec((Cout_p, 1), const),
        pl.BlockSpec((1, 1, Fpad), lambda b, s: (s, 0, 0)),
    ]
    args = [x_strips, w1_k, s1p, t1p, w2_k, s2p, t2p, mask_arr]
    if has_proj:
        wsk = params["wsk"][:, :, 0, 0]                       # (Cout, Cin)
        wsk_k = _pad_axis(_pad_axis(wsk, 1, Cin_p), 0, Cout_p).astype(compute_dtype)
        bsk_k = _pad_axis(params["bsk"].astype(f32), 0, Cout_p).reshape(Cout_p, 1)
        in_specs += [pl.BlockSpec((Cout_p, Cin_p), const),
                     pl.BlockSpec((Cout_p, 1), const)]
        args += [wsk_k, bsk_k]

    flops = 2 * B * H * W * (9 * Cin * Cout + 9 * Cout * Cout
                             + (Cin * Cout if has_proj else 0))
    bytes_accessed = int(sum(int(a.size) * jnp.dtype(a.dtype).itemsize for a in args)
                         + B * n_strips * Cout_p * Fpad * 4)

    out = pl.pallas_call(
        _make_kernel(shifts, has_proj),
        out_shape=jax.ShapeDtypeStruct((B, n_strips, Cout_p, Fpad), f32),
        grid_spec=pltpu.PrefetchScalarGridSpec(
            num_scalar_prefetch=0,
            grid=(B, n_strips),
            in_specs=in_specs,
            out_specs=pl.BlockSpec((1, 1, Cout_p, Fpad),
                                   lambda b, s: (b, s, 0, 0)),
        ),
        compiler_params=pltpu.CompilerParams(
            dimension_semantics=("parallel", "parallel"),
            vmem_limit_bytes=32 * 1024 * 1024,
        ),
        cost_estimate=pl.CostEstimate(
            flops=flops, transcendentals=0, bytes_accessed=bytes_accessed),
    )(*args)

    # stitch strips: drop channel/lane padding, un-flatten, keep the interior.
    out = out[:, :, :Cout, :F].reshape(B, n_strips, Cout, R, Cc)
    out = out[:, :, :, 2:TILE_H + 2, 2:W + 2]                 # (B, S, Cout, TILE_H, W)
    out = jnp.transpose(out, (0, 2, 1, 3, 4)).reshape(B, Cout, H, W)
    return out


# ----------------------------------------------------------------------------- reference
def reference_residual(x, params, *, eps=1e-5):
    """Pure-JAX reference (eval-mode BatchNorm), NCHW like the PyTorch module."""
    hi = jax.lax.Precision.HIGHEST

    def conv(z, w, b, pad):
        y = jax.lax.conv_general_dilated(
            z, w, window_strides=(1, 1), padding=pad,
            dimension_numbers=("NCHW", "OIHW", "NCHW"), precision=hi)
        return y + b[None, :, None, None]

    def bn(z, g, be, m, v):
        inv = g / jnp.sqrt(v + eps)
        return (z - m[None, :, None, None]) * inv[None, :, None, None] \
               + be[None, :, None, None]

    o1 = jax.nn.relu(bn(conv(x, params["w1"], params["b1"], ((1, 1), (1, 1))),
                        params["g1"], params["be1"], params["m1"], params["v1"]))
    o2 = bn(conv(o1, params["w2"], params["b2"], ((1, 1), (1, 1))),
            params["g2"], params["be2"], params["m2"], params["v2"])
    if params.get("wsk") is not None:
        skip = conv(x, params["wsk"], params["bsk"], ((0, 0), (0, 0)))
    else:
        skip = x
    return jax.nn.relu(o2 + skip)


def _make_params(key, cin, cout, with_skip):
    ks = jax.random.split(key, 16)
    n = lambda k, shape, s: s * jax.random.normal(k, shape, jnp.float32)
    u = lambda k, shape: jax.random.uniform(k, shape, jnp.float32, 0.5, 1.5)
    p = dict(
        w1=n(ks[0], (cout, cin, 3, 3), 0.2), b1=n(ks[1], (cout,), 0.1),
        g1=u(ks[2], (cout,)), be1=n(ks[3], (cout,), 0.1),
        m1=n(ks[4], (cout,), 0.1), v1=u(ks[5], (cout,)),
        w2=n(ks[6], (cout, cout, 3, 3), 0.2), b2=n(ks[7], (cout,), 0.1),
        g2=u(ks[8], (cout,)), be2=n(ks[9], (cout,), 0.1),
        m2=n(ks[10], (cout,), 0.1), v2=u(ks[11], (cout,)),
    )
    if with_skip:
        p["wsk"] = n(ks[12], (cout, cin, 1, 1), 0.2)
        p["bsk"] = n(ks[13], (cout,), 0.1)
    return p


if __name__ == "__main__":
    key = jax.random.PRNGKey(0)
    k_x1, k_p1, k_x2, k_p2 = jax.random.split(key, 4)

    # Case 1: in_channels != out_channels  ->  1x1-conv skip branch.
    B, Cin, Cout, H, W = 2, 4, 8, 16, 16
    x1 = jax.random.normal(k_x1, (B, Cin, H, W), jnp.float32)
    p1 = _make_params(k_p1, Cin, Cout, with_skip=True)
    out1 = jax.block_until_ready(residual_forward(x1, p1))
    ref1 = reference_residual(x1, p1)
    assert out1.shape == (B, Cout, H, W)
    err1 = float(jnp.max(jnp.abs(out1 - ref1)))
    assert jnp.allclose(out1, ref1, atol=1e-3, rtol=1e-3), err1

    # Case 2: in_channels == out_channels  ->  identity skip.
    x2 = jax.random.normal(k_x2, (B, Cout, H, W), jnp.float32)
    p2 = _make_params(k_p2, Cout, Cout, with_skip=False)
    out2 = jax.block_until_ready(residual_forward(x2, p2))
    ref2 = reference_residual(x2, p2)
    assert out2.shape == (B, Cout, H, W)
    err2 = float(jnp.max(jnp.abs(out2 - ref2)))
    assert jnp.allclose(out2, ref2, atol=1e-3, rtol=1e-3), err2

    print("KERNEL_OK")
</pallas_src>

<mosaic_0001>
module attributes {stable_mosaic.version = 11 : i64} {
  func.func @kernel(%arg0: i32, %arg1: i32, %arg2: memref<1x1x8x256xf32, #tpu.memory_space<vmem>>, %arg3: memref<8x72xf32, #tpu.memory_space<vmem>>, %arg4: memref<8x1xf32, #tpu.memory_space<vmem>>, %arg5: memref<8x1xf32, #tpu.memory_space<vmem>>, %arg6: memref<8x72xf32, #tpu.memory_space<vmem>>, %arg7: memref<8x1xf32, #tpu.memory_space<vmem>>, %arg8: memref<8x1xf32, #tpu.memory_space<vmem>>, %arg9: memref<1x1x256xf32, #tpu.memory_space<vmem>>, %arg10: memref<8x8xf32, #tpu.memory_space<vmem>>, %arg11: memref<8x1xf32, #tpu.memory_space<vmem>>, %arg12: memref<1x1x8x256xf32, #tpu.memory_space<vmem>>) attributes {dimension_semantics = [#tpu.dimension_semantics<parallel>, #tpu.dimension_semantics<parallel>], iteration_bounds = array<i64: 2, 4>, scalar_prefetch = 0 : i64, scratch_operands = 0 : i64, tpu.core_type = #tpu.core_type<tc>, window_params = [{transform_indices = @transform_0, window_bounds = array<i64: 1, 1, 8, 256>}, {pipeline_mode = #tpu.pipeline_mode<synchronous>, transform_indices = @transform_1, window_bounds = array<i64: 8, 72>}, {pipeline_mode = #tpu.pipeline_mode<synchronous>, transform_indices = @transform_2, window_bounds = array<i64: 8, 1>}, {pipeline_mode = #tpu.pipeline_mode<synchronous>, transform_indices = @transform_3, window_bounds = array<i64: 8, 1>}, {pipeline_mode = #tpu.pipeline_mode<synchronous>, transform_indices = @transform_4, window_bounds = array<i64: 8, 72>}, {pipeline_mode = #tpu.pipeline_mode<synchronous>, transform_indices = @transform_5, window_bounds = array<i64: 8, 1>}, {pipeline_mode = #tpu.pipeline_mode<synchronous>, transform_indices = @transform_6, window_bounds = array<i64: 8, 1>}, {transform_indices = @transform_7, window_bounds = array<i64: 1, 1, 256>}, {pipeline_mode = #tpu.pipeline_mode<synchronous>, transform_indices = @transform_8, window_bounds = array<i64: 8, 8>}, {pipeline_mode = #tpu.pipeline_mode<synchronous>, transform_indices = @transform_9, window_bounds = array<i64: 8, 1>}, {transform_indices = @transform_10, window_bounds = array<i64: 1, 1, 8, 256>}]} {
    %c0 = arith.constant 0 : index
    %c0_0 = arith.constant 0 : index
    %c0_1 = arith.constant 0 : index
    %c0_2 = arith.constant 0 : index
    %0 = vector.load %arg2[%c0, %c0_0, %c0_1, %c0_2] : memref<1x1x8x256xf32, #tpu.memory_space<vmem>>, vector<1x1x8x256xf32>
    %1 = vector.shape_cast %0 : vector<1x1x8x256xf32> to vector<8x256xf32>
    %c0_3 = arith.constant 0 : index
    %c0_4 = arith.constant 0 : index
    %c0_5 = arith.constant 0 : index
    %2 = vector.load %arg9[%c0_3, %c0_4, %c0_5] : memref<1x1x256xf32, #tpu.memory_space<vmem>>, vector<1x1x256xf32>
    %3 = vector.shape_cast %2 : vector<1x1x256xf32> to vector<1x256xf32>
    %c21_i32 = arith.constant 21 : i32
    %4 = tpu.dynamic_rotate %1 by %c21_i32 dim 1 : vector<8x256xf32>, i32 -> vector<8x256xf32>
    %c20_i32 = arith.constant 20 : i32
    %5 = tpu.dynamic_rotate %1 by %c20_i32 dim 1 : vector<8x256xf32>, i32 -> vector<8x256xf32>
    %c19_i32 = arith.constant 19 : i32
    %6 = tpu.dynamic_rotate %1 by %c19_i32 dim 1 : vector<8x256xf32>, i32 -> vector<8x256xf32>
    %c1_i32 = arith.constant 1 : i32
    %7 = tpu.dynamic_rotate %1 by %c1_i32 dim 1 : vector<8x256xf32>, i32 -> vector<8x256xf32>
    %c255_i32 = arith.constant 255 : i32
    %8 = tpu.dynamic_rotate %1 by %c255_i32 dim 1 : vector<8x256xf32>, i32 -> vector<8x256xf32>
    %c237_i32 = arith.constant 237 : i32
    %9 = tpu.dynamic_rotate %1 by %c237_i32 dim 1 : vector<8x256xf32>, i32 -> vector<8x256xf32>
    %c236_i32 = arith.constant 236 : i32
    %10 = tpu.dynamic_rotate %1 by %c236_i32 dim 1 : vector<8x256xf32>, i32 -> vector<8x256xf32>
    %c235_i32 = arith.constant 235 : i32
    %11 = tpu.dynamic_rotate %1 by %c235_i32 dim 1 : vector<8x256xf32>, i32 -> vector<8x256xf32>
    %12 = tpu.concatenate %4, %5, %6, %7, %1, %8, %9, %10, %11 in 0 : vector<8x256xf32>, vector<8x256xf32>, vector<8x256xf32>, vector<8x256xf32>, vector<8x256xf32>, vector<8x256xf32>, vector<8x256xf32>, vector<8x256xf32>, vector<8x256xf32> -> vector<72x256xf32>
    %c0_6 = arith.constant 0 : index
    %c0_7 = arith.constant 0 : index
    %13 = vector.load %arg3[%c0_6, %c0_7] : memref<8x72xf32, #tpu.memory_space<vmem>>, vector<8x72xf32>
    %cst = arith.constant dense<0.000000e+00> : vector<8x256xf32>
    %14 = tpu.matmul %13, %12, %cst {dimension_numbers = #tpu.dot_dimension_numbers<[1], [0], [0], [1], [0, 0, 1, 1], [], []>} : vector<8x72xf32>, vector<72x256xf32>, vector<8x256xf32> -> vector<8x256xf32>
    %c0_8 = arith.constant 0 : index
    %c0_9 = arith.constant 0 : index
    %15 = vector.load %arg4[%c0_8, %c0_9] : memref<8x1xf32, #tpu.memory_space<vmem>>, vector<8x1xf32>
    %16 = vector.broadcast %15 : vector<8x1xf32> to vector<8x256xf32>
    %17 = arith.mulf %14, %16 : vector<8x256xf32>
    %c0_10 = arith.constant 0 : index
    %c0_11 = arith.constant 0 : index
    %18 = vector.load %arg5[%c0_10, %c0_11] : memref<8x1xf32, #tpu.memory_space<vmem>>, vector<8x1xf32>
    %19 = vector.broadcast %18 : vector<8x1xf32> to vector<8x256xf32>
    %20 = arith.addf %17, %19 : vector<8x256xf32>
    %cst_12 = arith.constant 0.000000e+00 : f32
    %21 = vector.broadcast %cst_12 : f32 to vector<8x256xf32>
    %22 = arith.maximumf %20, %21 : vector<8x256xf32>
    %23 = vector.broadcast %3 : vector<1x256xf32> to vector<8x256xf32>
    %24 = arith.mulf %22, %23 : vector<8x256xf32>
    %c21_i32_13 = arith.constant 21 : i32
    %25 = tpu.dynamic_rotate %24 by %c21_i32_13 dim 1 : vector<8x256xf32>, i32 -> vector<8x256xf32>
    %c20_i32_14 = arith.constant 20 : i32
    %26 = tpu.dynamic_rotate %24 by %c20_i32_14 dim 1 : vector<8x256xf32>, i32 -> vector<8x256xf32>
    %c19_i32_15 = arith.constant 19 : i32
    %27 = tpu.dynamic_rotate %24 by %c19_i32_15 dim 1 : vector<8x256xf32>, i32 -> vector<8x256xf32>
    %c1_i32_16 = arith.constant 1 : i32
    %28 = tpu.dynamic_rotate %24 by %c1_i32_16 dim 1 : vector<8x256xf32>, i32 -> vector<8x256xf32>
    %c255_i32_17 = arith.constant 255 : i32
    %29 = tpu.dynamic_rotate %24 by %c255_i32_17 dim 1 : vector<8x256xf32>, i32 -> vector<8x256xf32>
    %c237_i32_18 = arith.constant 237 : i32
    %30 = tpu.dynamic_rotate %24 by %c237_i32_18 dim 1 : vector<8x256xf32>, i32 -> vector<8x256xf32>
    %c236_i32_19 = arith.constant 236 : i32
    %31 = tpu.dynamic_rotate %24 by %c236_i32_19 dim 1 : vector<8x256xf32>, i32 -> vector<8x256xf32>
    %c235_i32_20 = arith.constant 235 : i32
    %32 = tpu.dynamic_rotate %24 by %c235_i32_20 dim 1 : vector<8x256xf32>, i32 -> vector<8x256xf32>
    %33 = tpu.concatenate %25, %26, %27, %28, %24, %29, %30, %31, %32 in 0 : vector<8x256xf32>, vector<8x256xf32>, vector<8x256xf32>, vector<8x256xf32>, vector<8x256xf32>, vector<8x256xf32>, vector<8x256xf32>, vector<8x256xf32>, vector<8x256xf32> -> vector<72x256xf32>
    %c0_21 = arith.constant 0 : index
    %c0_22 = arith.constant 0 : index
    %34 = vector.load %arg6[%c0_21, %c0_22] : memref<8x72xf32, #tpu.memory_space<vmem>>, vector<8x72xf32>
    %cst_23 = arith.constant dense<0.000000e+00> : vector<8x256xf32>
    %35 = tpu.matmul %34, %33, %cst_23 {dimension_numbers = #tpu.dot_dimension_numbers<[1], [0], [0], [1], [0, 0, 1, 1], [], []>} : vector<8x72xf32>, vector<72x256xf32>, vector<8x256xf32> -> vector<8x256xf32>
    %c0_24 = arith.constant 0 : index
    %c0_25 = arith.constant 0 : index
    %36 = vector.load %arg7[%c0_24, %c0_25] : memref<8x1xf32, #tpu.memory_space<vmem>>, vector<8x1xf32>
    %37 = vector.broadcast %36 : vector<8x1xf32> to vector<8x256xf32>
    %38 = arith.mulf %35, %37 : vector<8x256xf32>
    %c0_26 = arith.constant 0 : index
    %c0_27 = arith.constant 0 : index
    %39 = vector.load %arg8[%c0_26, %c0_27] : memref<8x1xf32, #tpu.memory_space<vmem>>, vector<8x1xf32>
    %40 = vector.broadcast %39 : vector<8x1xf32> to vector<8x256xf32>
    %41 = arith.addf %38, %40 : vector<8x256xf32>
    %c0_28 = arith.constant 0 : index
    %c0_29 = arith.constant 0 : index
    %42 = vector.load %arg10[%c0_28, %c0_29] : memref<8x8xf32, #tpu.memory_space<vmem>>, vector<8x8xf32>
    %cst_30 = arith.constant dense<0.000000e+00> : vector<8x256xf32>
    %43 = tpu.matmul %42, %1, %cst_30 {dimension_numbers = #tpu.dot_dimension_numbers<[1], [0], [0], [1], [0, 0, 1, 1], [], []>} : vector<8x8xf32>, vector<8x256xf32>, vector<8x256xf32> -> vector<8x256xf32>
    %c0_31 = arith.constant 0 : index
    %c0_32 = arith.constant 0 : index
    %44 = vector.load %arg11[%c0_31, %c0_32] : memref<8x1xf32, #tpu.memory_space<vmem>>, vector<8x1xf32>
    %45 = vector.broadcast %44 : vector<8x1xf32> to vector<8x256xf32>
    %46 = arith.addf %43, %45 : vector<8x256xf32>
    %47 = arith.addf %41, %46 : vector<8x256xf32>
    %cst_33 = arith.constant 0.000000e+00 : f32
    %48 = vector.broadcast %cst_33 : f32 to vector<8x256xf32>
    %49 = arith.maximumf %47, %48 : vector<8x256xf32>
    %c0_34 = arith.constant 0 : index
    %c0_35 = arith.constant 0 : index
    %c0_36 = arith.constant 0 : index
    %c0_37 = arith.constant 0 : index
    %50 = vector.load %arg12[%c0_34, %c0_35, %c0_36, %c0_37] : memref<1x1x8x256xf32, #tpu.memory_space<vmem>>, vector<1x1x8x256xf32>
    %51 = vector.shape_cast %50 : vector<1x1x8x256xf32> to vector<8x256xf32>
    %52 = vector.shape_cast %49 : vector<8x256xf32> to vector<1x1x8x256xf32>
    tpu.vector_store %arg12[%c0_34, %c0_35, %c0_36, %c0_37], %52 {strides = array<i32>} : memref<1x1x8x256xf32, #tpu.memory_space<vmem>>, vector<1x1x8x256xf32>,
    return
  }
  func.func @transform_0(%arg0: i32, %arg1: i32) -> (i32, i32, i32, i32) {
    %c0_i32 = arith.constant 0 : i32
    %c0_i32_0 = arith.constant 0 : i32
    %c0_i32_1 = arith.constant 0 : i32
    return %arg0, %arg1, %c0_i32, %c0_i32_0 : i32, i32, i32, i32
  }
  func.func @transform_1(%arg0: i32, %arg1: i32) -> (i32, i32) {
    %c0_i32 = arith.constant 0 : i32
    %c0_i32_0 = arith.constant 0 : i32
    %c0_i32_1 = arith.constant 0 : i32
    return %c0_i32, %c0_i32_0 : i32, i32
  }
  func.func @transform_2(%arg0: i32, %arg1: i32) -> (i32, i32) {
    %c0_i32 = arith.constant 0 : i32
    %c0_i32_0 = arith.constant 0 : i32
    %c0_i32_1 = arith.constant 0 : i32
    return %c0_i32, %c0_i32_0 : i32, i32
  }
  func.func @transform_3(%arg0: i32, %arg1: i32) -> (i32, i32) {
    %c0_i32 = arith.constant 0 : i32
    %c0_i32_0 = arith.constant 0 : i32
    %c0_i32_1 = arith.constant 0 : i32
    return %c0_i32, %c0_i32_0 : i32, i32
  }
  func.func @transform_4(%arg0: i32, %arg1: i32) -> (i32, i32) {
    %c0_i32 = arith.constant 0 : i32
    %c0_i32_0 = arith.constant 0 : i32
    %c0_i32_1 = arith.constant 0 : i32
    return %c0_i32, %c0_i32_0 : i32, i32
  }
  func.func @transform_5(%arg0: i32, %arg1: i32) -> (i32, i32) {
    %c0_i32 = arith.constant 0 : i32
    %c0_i32_0 = arith.constant 0 : i32
    %c0_i32_1 = arith.constant 0 : i32
    return %c0_i32, %c0_i32_0 : i32, i32
  }
  func.func @transform_6(%arg0: i32, %arg1: i32) -> (i32, i32) {
    %c0_i32 = arith.constant 0 : i32
    %c0_i32_0 = arith.constant 0 : i32
    %c0_i32_1 = arith.constant 0 : i32
    return %c0_i32, %c0_i32_0 : i32, i32
  }
  func.func @transform_7(%arg0: i32, %arg1: i32) -> (i32, i32, i32) {
    %c0_i32 = arith.constant 0 : i32
    %c0_i32_0 = arith.constant 0 : i32
    %c0_i32_1 = arith.constant 0 : i32
    return %arg1, %c0_i32, %c0_i32_0 : i32, i32, i32
  }
  func.func @transform_8(%arg0: i32, %arg1: i32) -> (i32, i32) {
    %c0_i32 = arith.constant 0 : i32
    %c0_i32_0 = arith.constant 0 : i32
    %c0_i32_1 = arith.constant 0 : i32
    return %c0_i32, %c0_i32_0 : i32, i32
  }
  func.func @transform_9(%arg0: i32, %arg1: i32) -> (i32, i32) {
    %c0_i32 = arith.constant 0 : i32
    %c0_i32_0 = arith.constant 0 : i32
    %c0_i32_1 = arith.constant 0 : i32
    return %c0_i32, %c0_i32_0 : i32, i32
  }
  func.func @transform_10(%arg0: i32, %arg1: i32) -> (i32, i32, i32, i32) {
    %c0_i32 = arith.constant 0 : i32
    %c0_i32_0 = arith.constant 0 : i32
    %c0_i32_1 = arith.constant 0 : i32
    return %arg0, %arg1, %c0_i32, %c0_i32_0 : i32, i32, i32, i32
  }
}

</mosaic_0001>

<llo_original>
// kernel: tpu_custom_call.1
$region0: #{tpu_custom_call.1}
  #allocation0 [shape = 'u32[]', space=smem, size = 0x4, offset = 0x4, fixed_abs, tag = 'smem constant byte address 0x4 - core index']
  #allocation1 [shape = 'u32[144,128]{1,0:T(1,128)}', space=vmem, size = 0x12000, scoped, tag = 'internal scratch']
  %s0 = inlined_call_operand.hbm [shape: f32[2,4,8,256], index: 0, kind: input, shape index: {}]
  %s1 = inlined_call_operand.vmem [shape: f32[8,72], index: 1, kind: input, shape index: {}]
  %s2 = inlined_call_operand.vmem [shape: f32[8,1], index: 2, kind: input, shape index: {}]
  %s3 = inlined_call_operand.vmem [shape: f32[8,1], index: 3, kind: input, shape index: {}]
  %s4 = inlined_call_operand.vmem [shape: f32[8,72], index: 4, kind: input, shape index: {}]
  %s5 = inlined_call_operand.vmem [shape: f32[8,1], index: 5, kind: input, shape index: {}]
  %s6 = inlined_call_operand.vmem [shape: f32[8,1], index: 6, kind: input, shape index: {}]
  %s7 = inlined_call_operand.vmem [shape: f32[4,1,256], index: 7, kind: input, shape index: {}]
  %s8 = inlined_call_operand.vmem [shape: f32[8,8], index: 8, kind: input, shape index: {}]
  %s9 = inlined_call_operand.vmem [shape: f32[8,1], index: 9, kind: input, shape index: {}]
  %s10 = inlined_call_operand.hbm [shape: f32[2,4,8,256], index: 10, kind: output, shape index: {}]
  %s11 = sld [smem:[#allocation0]]
  $region77: #{tpu_custom_call.1} parent=0
    _
  %s13 = ssub.s32 1, %s11
  %s14 = scalar_select 0, %s13, %s11
  $region1: #{tpu_custom_call.1} parent=0
    #allocation2 [shape = 'u8[16384]{0}', space=vmem, size = 0x4000, scoped, tag = 'input window, operand 0']
    #allocation3 [shape = 's32[2]{0}', space=sflag, size = 0x8, scoped, tag = 'scoped memory for tpu_custom_call.1']
    #allocation4 [shape = 's32[2]{0}', space=sflag, size = 0x8, scoped, tag = 'scoped memory for tpu_custom_call.1']
    #allocation5 [shape = 'u8[16384]{0}', space=vmem, size = 0x4000, scoped, tag = 'output window, operand 0']
    %15 = vsyncpa [#allocation3], 0
    %s16 = scalar_lea.sflag [#allocation3], 1
    %17 = vsyncpa %s16, 0
    %18 = vsyncpa [#allocation4], 0
    %s19 = scalar_lea.sflag [#allocation4], 1
    %20 = vsyncpa %s19, 0
    loop: start=0, step=1, limit=10
    $region2: #{tpu_custom_call.1} parent=1 // loop_pre_header
      _
    $region3: #{tpu_custom_call.1} parent=1 // loop_header
      %s22 = sphi 0, %s26
      %p23 = scmp.ge.s32.totalorder %s22, 10
      %s29 = sphi 0, %s41
      %s30 = sphi 0, %s37
      %s31 = sphi 0, %s29
      %s32 = sphi 0, %s30
      %s33 = sphi 0, %s31
      %s34 = sphi 0, %s32
      %s46 = sphi 0, %s48
      %s49 = sphi 0, %s46
      %s50 = sphi 0, %s49
      %s66 = sphi 0, %s50
      %s70 = sphi 0, %s70
      %s72 = sphi 0, %s70
      %s73 = sphi 0, %s72
      %s87 = sphi 0, %s73
      %s91 = sphi 0, %s91
      %s93 = sphi 0, %s91
      %s94 = sphi 0, %s93
      %s108 = sphi 0, %s94
      %s112 = sphi 0, %s112
      %s114 = sphi 0, %s112
      %s115 = sphi 0, %s114
      %s129 = sphi 0, %s115
      %s133 = sphi 0, %s133
      %s135 = sphi 0, %s133
      %s136 = sphi 0, %s135
      %s150 = sphi 0, %s136
      %s154 = sphi 0, %s154
      %s156 = sphi 0, %s154
      %s157 = sphi 0, %s156
      %s171 = sphi 0, %s157
      %s175 = sphi 0, %s175
      %s177 = sphi 0, %s175
      %s178 = sphi 0, %s177
      %s192 = sphi 0, %s178
      %s198 = sphi 0, %s200
      %s201 = sphi 0, %s198
      %s202 = sphi 0, %s201
      %s218 = sphi 0, %s202
      %s222 = sphi 0, %s222
      %s224 = sphi 0, %s222
      %s225 = sphi 0, %s224
      %s239 = sphi 0, %s225
      %s243 = sphi 0, %s243
      %s245 = sphi 0, %s243
      %s246 = sphi 0, %s245
      %s260 = sphi 0, %s246
      %s268 = sphi 0, %s270
      %s271 = sphi 0, %s268
      %s272 = sphi 0, %s271
      %s288 = sphi 0, %s272
    $region4: #{tpu_custom_call.1} parent=1 // loop_header_branch
      %25 = sbr.rel (%p23) target = $region8
    $region5: #{tpu_custom_call.1} parent=1 // loop_body
      %s27 = ssub.s32 %s22, 1
      %s28 = ssub.s32 %s22, 2
      %s35 = sadd.s32 1, %s30
      %p36 = scmp.ge.s32.totalorder %s35, 4
      %s37 = scalar_select %p36, 0, %s35
      %s38 = sadd.s32 1, %s29
      %s39 = scalar_select %p36, %s38, %s29
      %p40 = scmp.ge.s32.totalorder %s39, 2
      %s41 = scalar_select %p40, 0, %s39
      %s42 = ssub.s32 %s29, %s41
      %s43 = ssub.s32 %s30, %s37
      %s44 = sor.u32 %s42, %s43
      %p45 = scmp.eq.s32.totalorder %s44, 0
      %s47 = sadd.s32 %s46, 1
      %s48 = scalar_select %p45, %s46, %s47
      %p51 = pneg %p45
      %p52 = scmp.eq.s32.totalorder %s22, 7
      %p53 = por %p51, %p52
      %p54 = scmp.ne.s32.totalorder %s46, %s49
      %p55 = scmp.eq.s32.totalorder %s22, 0
      %p56 = por %p54, %p55
      %p57 = scmp.ne.s32.totalorder %s46, %s49
      %p58 = scmp.eq.s32.totalorder %s27, 7
      %p59 = por %p57, %p58
      %p60 = scmp.ne.s32.totalorder %s49, %s50
      %p61 = scmp.eq.s32.totalorder %s27, 0
      %p62 = por %p60, %p61
      %p63 = scmp.ne.s32.totalorder %s49, %s50
      %p64 = scmp.eq.s32.totalorder %s28, 7
      %p65 = por %p63, %p64
      %p67 = scmp.ne.s32.totalorder %s50, %s66
      %p68 = scmp.eq.s32.totalorder %s28, 0
      %p69 = por %p67, %p68
      %s71 = sadd.s32 %s70, 1
      %p74 = scmp.eq.s32.totalorder %s22, 7
      %p75 = scmp.ne.s32.totalorder %s70, %s72
      %p76 = scmp.eq.s32.totalorder %s22, 0
      %p77 = por %p75, %p76
      %p78 = scmp.ne.s32.totalorder %s70, %s72
      %p79 = scmp.eq.s32.totalorder %s27, 7
      %p80 = por %p78, %p79
      %p81 = scmp.ne.s32.totalorder %s72, %s73
      %p82 = scmp.eq.s32.totalorder %s27, 0
      %p83 = por %p81, %p82
      %p84 = scmp.ne.s32.totalorder %s72, %s73
      %p85 = scmp.eq.s32.totalorder %s28, 7
      %p86 = por %p84, %p85
      %p88 = scmp.ne.s32.totalorder %s73, %s87
      %p89 = scmp.eq.s32.totalorder %s28, 0
      %p90 = por %p88, %p89
      %s92 = sadd.s32 %s91, 1
      %p95 = scmp.eq.s32.totalorder %s22, 7
      %p96 = scmp.ne.s32.totalorder %s91, %s93
      %p97 = scmp.eq.s32.totalorder %s22, 0
      %p98 = por %p96, %p97
      %p99 = scmp.ne.s32.totalorder %s91, %s93
      %p100 = scmp.eq.s32.totalorder %s27, 7
      %p101 = por %p99, %p100
      %p102 = scmp.ne.s32.totalorder %s93, %s94
      %p103 = scmp.eq.s32.totalorder %s27, 0
      %p104 = por %p102, %p103
      %p105 = scmp.ne.s32.totalorder %s93, %s94
      %p106 = scmp.eq.s32.totalorder %s28, 7
      %p107 = por %p105, %p106
      %p109 = scmp.ne.s32.totalorder %s94, %s108
      %p110 = scmp.eq.s32.totalorder %s28, 0
      %p111 = por %p109, %p110
      %s113 = sadd.s32 %s112, 1
      %p116 = scmp.eq.s32.totalorder %s22, 7
      %p117 = scmp.ne.s32.totalorder %s112, %s114
      %p118 = scmp.eq.s32.totalorder %s22, 0
      %p119 = por %p117, %p118
      %p120 = scmp.ne.s32.totalorder %s112, %s114
      %p121 = scmp.eq.s32.totalorder %s27, 7
      %p122 = por %p120, %p121
      %p123 = scmp.ne.s32.totalorder %s114, %s115
      %p124 = scmp.eq.s32.totalorder %s27, 0
      %p125 = por %p123, %p124
      %p126 = scmp.ne.s32.totalorder %s114, %s115
      %p127 = scmp.eq.s32.totalorder %s28, 7
      %p128 = por %p126, %p127
      %p130 = scmp.ne.s32.totalorder %s115, %s129
      %p131 = scmp.eq.s32.totalorder %s28, 0
      %p132 = por %p130, %p131
      %s134 = sadd.s32 %s133, 1
      %p137 = scmp.eq.s32.totalorder %s22, 7
      %p138 = scmp.ne.s32.totalorder %s133, %s135
      %p139 = scmp.eq.s32.totalorder %s22, 0
      %p140 = por %p138, %p139
      %p141 = scmp.ne.s32.totalorder %s133, %s135
      %p142 = scmp.eq.s32.totalorder %s27, 7
      %p143 = por %p141, %p142
      %p144 = scmp.ne.s32.totalorder %s135, %s136
      %p145 = scmp.eq.s32.totalorder %s27, 0
      %p146 = por %p144, %p145
      %p147 = scmp.ne.s32.totalorder %s135, %s136
      %p148 = scmp.eq.s32.totalorder %s28, 7
      %p149 = por %p147, %p148
      %p151 = scmp.ne.s32.totalorder %s136, %s150
      %p152 = scmp.eq.s32.totalorder %s28, 0
      %p153 = por %p151, %p152
      %s155 = sadd.s32 %s154, 1
      %p158 = scmp.eq.s32.totalorder %s22, 7
      %p159 = scmp.ne.s32.totalorder %s154, %s156
      %p160 = scmp.eq.s32.totalorder %s22, 0
      %p161 = por %p159, %p160
      %p162 = scmp.ne.s32.totalorder %s154, %s156
      %p163 = scmp.eq.s32.totalorder %s27, 7
      %p164 = por %p162, %p163
      %p165 = scmp.ne.s32.totalorder %s156, %s157
      %p166 = scmp.eq.s32.totalorder %s27, 0
      %p167 = por %p165, %p166
      %p168 = scmp.ne.s32.totalorder %s156, %s157
      %p169 = scmp.eq.s32.totalorder %s28, 7
      %p170 = por %p168, %p169
      %p172 = scmp.ne.s32.totalorder %s157, %s171
      %p173 = scmp.eq.s32.totalorder %s28, 0
      %p174 = por %p172, %p173
      %s176 = sadd.s32 %s175, 1
      %p179 = scmp.eq.s32.totalorder %s22, 7
      %p180 = scmp.ne.s32.totalorder %s175, %s177
      %p181 = scmp.eq.s32.totalorder %s22, 0
      %p182 = por %p180, %p181
      %p183 = scmp.ne.s32.totalorder %s175, %s177
      %p184 = scmp.eq.s32.totalorder %s27, 7
      %p185 = por %p183, %p184
      %p186 = scmp.ne.s32.totalorder %s177, %s178
      %p187 = scmp.eq.s32.totalorder %s27, 0
      %p188 = por %p186, %p187
      %p189 = scmp.ne.s32.totalorder %s177, %s178
      %p190 = scmp.eq.s32.totalorder %s28, 7
      %p191 = por %p189, %p190
      %p193 = scmp.ne.s32.totalorder %s178, %s192
      %p194 = scmp.eq.s32.totalorder %s28, 0
      %p195 = por %p193, %p194
      %s196 = ssub.s32 %s30, %s37
      %p197 = scmp.eq.s32.totalorder %s196, 0
      %s199 = sadd.s32 %s198, 1
      %s200 = scalar_select %p197, %s198, %s199
      %p203 = pneg %p197
      %p204 = scmp.eq.s32.totalorder %s22, 7
      %p205 = por %p203, %p204
      %p206 = scmp.ne.s32.totalorder %s198, %s201
      %p207 = scmp.eq.s32.totalorder %s22, 0
      %p208 = por %p206, %p207
      %p209 = scmp.ne.s32.totalorder %s198, %s201
      %p210 = scmp.eq.s32.totalorder %s27, 7
      %p211 = por %p209, %p210
      %p212 = scmp.ne.s32.totalorder %s201, %s202
      %p213 = scmp.eq.s32.totalorder %s27, 0
      %p214 = por %p212, %p213
      %p215 = scmp.ne.s32.totalorder %s201, %s202
      %p216 = scmp.eq.s32.totalorder %s28, 7
      %p217 = por %p215, %p216
      %p219 = scmp.ne.s32.totalorder %s202, %s218
      %p220 = scmp.eq.s32.totalorder %s28, 0
      %p221 = por %p219, %p220
      %s223 = sadd.s32 %s222, 1
      %p226 = scmp.eq.s32.totalorder %s22, 7
      %p227 = scmp.ne.s32.totalorder %s222, %s224
      %p228 = scmp.eq.s32.totalorder %s22, 0
      %p229 = por %p227, %p228
      %p230 = scmp.ne.s32.totalorder %s222, %s224
      %p231 = scmp.eq.s32.totalorder %s27, 7
      %p232 = por %p230, %p231
      %p233 = scmp.ne.s32.totalorder %s224, %s225
      %p234 = scmp.eq.s32.totalorder %s27, 0
      %p235 = por %p233, %p234
      %p236 = scmp.ne.s32.totalorder %s224, %s225
      %p237 = scmp.eq.s32.totalorder %s28, 7
      %p238 = por %p236, %p237
      %p240 = scmp.ne.s32.totalorder %s225, %s239
      %p241 = scmp.eq.s32.totalorder %s28, 0
      %p242 = por %p240, %p241
      %s244 = sadd.s32 %s243, 1
      %p247 = scmp.eq.s32.totalorder %s22, 7
      %p248 = scmp.ne.s32.totalorder %s243, %s245
      %p249 = scmp.eq.s32.totalorder %s22, 0
      %p250 = por %p248, %p249
      %p251 = scmp.ne.s32.totalorder %s243, %s245
      %p252 = scmp.eq.s32.totalorder %s27, 7
      %p253 = por %p251, %p252
      %p254 = scmp.ne.s32.totalorder %s245, %s246
      %p255 = scmp.eq.s32.totalorder %s27, 0
      %p256 = por %p254, %p255
      %p257 = scmp.ne.s32.totalorder %s245, %s246
      %p258 = scmp.eq.s32.totalorder %s28, 7
      %p259 = por %p257, %p258
      %p261 = scmp.ne.s32.totalorder %s246, %s260
      %p262 = scmp.eq.s32.totalorder %s28, 0
      %p263 = por %p261, %p262
      %s264 = ssub.s32 %s29, %s41
      %s265 = ssub.s32 %s30, %s37
      %s266 = sor.u32 %s264, %s265
      %p267 = scmp.eq.s32.totalorder %s266, 0
      %s269 = sadd.s32 %s268, 1
      %s270 = scalar_select %p267, %s268, %s269
      %p273 = pneg %p267
      %p274 = scmp.eq.s32.totalorder %s22, 7
      %p275 = por %p273, %p274
      %p276 = scmp.ne.s32.totalorder %s268, %s271
      %p277 = scmp.eq.s32.totalorder %s22, 0
      %p278 = por %p276, %p277
      %p279 = scmp.ne.s32.totalorder %s268, %s271
      %p280 = scmp.eq.s32.totalorder %s27, 7
      %p281 = por %p279, %p280
      %p282 = scmp.ne.s32.totalorder %s271, %s272
      %p283 = scmp.eq.s32.totalorder %s27, 0
      %p284 = por %p282, %p283
      %p285 = scmp.ne.s32.totalorder %s271, %s272
      %p286 = scmp.eq.s32.totalorder %s28, 7
      %p287 = por %p285, %p286
      %p289 = scmp.ne.s32.totalorder %s272, %s288
      %p290 = scmp.eq.s32.totalorder %s28, 0
      %p291 = por %p289, %p290
      %p292 = scmp.le.s32.totalorder 1, %s22
      %p293 = scmp.lt.s32.totalorder %s22, 9
      %p294 = pnand %p292, %p293
      %p295 = pneg %p294
      // Predicated region
      $region9: #{tpu_custom_call.1} parent=5 // pred_check
        _
      $region10: #{tpu_custom_call.1} parent=5 // pred_check_branch
        %297 = sbr.rel (%p294) target = $region12
      $region11: #{tpu_custom_call.1} parent=5 // pred_region
        %s298 = ssub.s32 %s22, 1
        // Predicated region
        $region13: #{tpu_custom_call.1} parent=11 // pred_check
          %p299 = pneg %p83
        $region14: #{tpu_custom_call.1} parent=11 // pred_check_branch
          %301 = sbr.rel (%p299) target = $region16
        $region15: #{tpu_custom_call.1} parent=11 // pred_region
          _
        $region16: #{tpu_custom_call.1} parent=11 // pred_fallthru
          _
        // Predicated region
        $region17: #{tpu_custom_call.1} parent=11 // pred_check
          %p302 = pneg %p104
        $region18: #{tpu_custom_call.1} parent=11 // pred_check_branch
          %304 = sbr.rel (%p302) target = $region20
        $region19: #{tpu_custom_call.1} parent=11 // pred_region
          _
        $region20: #{tpu_custom_call.1} parent=11 // pred_fallthru
          _
        // Predicated region
        $region21: #{tpu_custom_call.1} parent=11 // pred_check
          %p305 = pneg %p125
        $region22: #{tpu_custom_call.1} parent=11 // pred_check_branch
          %307 = sbr.rel (%p305) target = $region24
        $region23: #{tpu_custom_call.1} parent=11 // pred_region
          _
        $region24: #{tpu_custom_call.1} parent=11 // pred_fallthru
          _
        // Predicated region
        $region25: #{tpu_custom_call.1} parent=11 // pred_check
          %p308 = pneg %p146
        $region26: #{tpu_custom_call.1} parent=11 // pred_check_branch
          %310 = sbr.rel (%p308) target = $region28
        $region27: #{tpu_custom_call.1} parent=11 // pred_region
          _
        $region28: #{tpu_custom_call.1} parent=11 // pred_fallthru
          _
        // Predicated region
        $region29: #{tpu_custom_call.1} parent=11 // pred_check
          %p311 = pneg %p167
        $region30: #{tpu_custom_call.1} parent=11 // pred_check_branch
          %313 = sbr.rel (%p311) target = $region32
        $region31: #{tpu_custom_call.1} parent=11 // pred_region
          _
        $region32: #{tpu_custom_call.1} parent=11 // pred_fallthru
          _
        // Predicated region
        $region33: #{tpu_custom_call.1} parent=11 // pred_check
          %p314 = pneg %p188
        $region34: #{tpu_custom_call.1} parent=11 // pred_check_branch
          %316 = sbr.rel (%p314) target = $region36
        $region35: #{tpu_custom_call.1} parent=11 // pred_region
          _
        $region36: #{tpu_custom_call.1} parent=11 // pred_fallthru
          _
        // Predicated region
        $region37: #{tpu_custom_call.1} parent=11 // pred_check
          %p317 = pneg %p235
        $region38: #{tpu_custom_call.1} parent=11 // pred_check_branch
          %319 = sbr.rel (%p317) target = $region40
        $region39: #{tpu_custom_call.1} parent=11 // pred_region
          _
        $region40: #{tpu_custom_call.1} parent=11 // pred_fallthru
          _
        // Predicated region
        $region41: #{tpu_custom_call.1} parent=11 // pred_check
          %p320 = pneg %p256
        $region42: #{tpu_custom_call.1} parent=11 // pred_check_branch
          %322 = sbr.rel (%p320) target = $region44
        $region43: #{tpu_custom_call.1} parent=11 // pred_region
          _
        $region44: #{tpu_custom_call.1} parent=11 // pred_fallthru
          _
      $region12: #{tpu_custom_call.1} parent=5 // pred_fallthru
        _
      %p323 = scmp.lt.s32.totalorder %s22, 8
      // Predicated region
      $region45: #{tpu_custom_call.1} parent=5 // pred_check
        %p324 = pneg %p323
      $region46: #{tpu_custom_call.1} parent=5 // pred_check_branch
        %326 = sbr.rel (%p324) target = $region48
      $region47: #{tpu_custom_call.1} parent=5 // pred_region
        // Predicated region
        $region49: #{tpu_custom_call.1} parent=47 // pred_check
          %p327 = pneg %p56
        $region50: #{tpu_custom_call.1} parent=47 // pred_check_branch
          %329 = sbr.rel (%p327) target = $region52
        $region51: #{tpu_custom_call.1} parent=47 // pred_region
          %s330 = sand.u32 %s46, 1
          %s331 = scalar_lea.sflag [#allocation3], %s330
          %s332 = sand.u32 %s46, 1
          %s333 = smul.addr %s332, 16
          %s334 = scalar_lea.vmem [#allocation2], %s333
          %s336 = ssub.s32 256, 256
          %337 = vsyncadd %s331, %s336
          %s338 = smul.addr %s30, 2
          %s339 = smul.addr %s29, 8
          %s340 = sadd.s32 %s338, %s339
          %s341 = smul.addr %s340, 128
          %s342 = scalar_lea.hbm %s0, %s341
          %s344 = sshll.u32 %s334, 4
          %s345 = int_to_ptr.vmem [resolvable:$true] %s344
          %347 = dma.hbm_to_vmem [thread:$0]  %s342, 256, %s345, %s331
        $region52: #{tpu_custom_call.1} parent=47 // pred_fallthru
          _
        // Predicated region
        $region53: #{tpu_custom_call.1} parent=47 // pred_check
          %p348 = pneg %p208
        $region54: #{tpu_custom_call.1} parent=47 // pred_check_branch
          %350 = sbr.rel (%p348) target = $region56
        $region55: #{tpu_custom_call.1} parent=47 // pred_region
          %p351 = scmp.lt.s32.totalorder %s30, 3
          %s352 = scalar_select %p351, %s30, 3
          %s353 = smul.addr %s352, 2
          %s354 = scalar_lea.vmem %s7, %s353
        $region56: #{tpu_custom_call.1} parent=47 // pred_fallthru
          _
      $region48: #{tpu_custom_call.1} parent=5 // pred_fallthru
        _
      %p355 = scmp.le.s32.totalorder 1, %s22
      %p356 = scmp.lt.s32.totalorder %s22, 9
      %p357 = pnand %p355, %p356
      %p358 = pneg %p357
      // Predicated region
      $region57: #{tpu_custom_call.1} parent=5 // pred_check
        _
      $region58: #{tpu_custom_call.1} parent=5 // pred_check_branch
        %360 = sbr.rel (%p357) target = $region60
      $region59: #{tpu_custom_call.1} parent=5 // pred_region
        %s361 = ssub.s32 %s22, 1
        %s362 = sand.u32 %s49, 1
        %s363 = scalar_lea.sflag [#allocation3], %s362
        %s364 = sand.u32 %s49, 1
        %s365 = smul.addr %s364, 16
        %s366 = scalar_lea.vmem [#allocation2], %s365
        // Predicated region
        $region61: #{tpu_custom_call.1} parent=59 // pred_check
          %p367 = pneg %p62
        $region62: #{tpu_custom_call.1} parent=59 // pred_check_branch
          %369 = sbr.rel (%p367) target = $region64
        $region63: #{tpu_custom_call.1} parent=59 // pred_region
          %370 = dma.done %s363, 256
        $region64: #{tpu_custom_call.1} parent=59 // pred_fallthru
          _
        %s371 = sand.u32 %s49, 1
        %s372 = scalar_lea.sflag [#allocation3], %s371
        %s373 = sand.u32 %s49, 1
        %s374 = smul.addr %s373, 16
        %s375 = scalar_lea.vmem [#allocation2], %s374
        %p376 = pneg %p62
        %p377 = pneg %p59
        %p378 = pneg %p83
        %p379 = pneg %p80
        %p380 = pneg %p104
        %p381 = pneg %p101
        %p382 = pneg %p125
        %p383 = pneg %p122
        %p384 = pneg %p146
        %p385 = pneg %p143
        %p386 = pneg %p167
        %p387 = pneg %p164
        %p388 = pneg %p188
        %p389 = pneg %p185
        %p390 = scmp.lt.s32.totalorder %s32, 3
        %s391 = scalar_select %p390, %s32, 3
        %s392 = smul.addr %s391, 2
        %s393 = scalar_lea.vmem %s7, %s392
        %p394 = pneg %p214
        %p395 = pneg %p211
        %p396 = pneg %p235
        %p397 = pneg %p232
        %p398 = pneg %p256
        %p399 = pneg %p253
        %p400 = pneg %p284
        %p401 = pneg %p281
        %s402 = sand.u32 %s271, 1
        %s403 = scalar_lea.sflag [#allocation4], %s402
        %s404 = sand.u32 %s271, 1
        %s405 = smul.addr %s404, 16
        %s406 = scalar_lea.vmem [#allocation5], %s405
        %p407 = scmp.lt.s32.totalorder %s32, 3
        %s408 = scalar_select %p407, %s32, 3
        %s409 = smul.addr %s408, 2
        %s410 = scalar_lea.vmem %s7, %s409
        %v411 = vld [vmem:[%s366] sm:$0xff]
        %v412 = vld [vmem:[%s366 + $0x8] sm:$0xff]
        %v413 = vld [vmem:[%s410] sm:$0x3]
        %414 = vrot.lane.b32.xlu0 %v411, 21
        %v415 = vpop.permute.xlu0 %414
        %416 = vrot.lane.b32.xlu0 %v412, 21
        %v417 = vpop.permute.xlu0 %416
        %v418 = vlaneseq
        %v419 = vand.u32 %v418, 127
        %vm420 = vcmp.lt.s32.totalorder %v419, 21
        %v421 = vsel %vm420, %v415, %v417
        %v422 = vsel %vm420, %v417, %v415
        %423 = vrot.lane.b32.xlu0 %v411, 20
        %v424 = vpop.permute.xlu0 %423
        %425 = vrot.lane.b32.xlu0 %v412, 20
        %v426 = vpop.permute.xlu0 %425
        %vm427 = vcmp.lt.s32.totalorder %v419, 20
        %v428 = vsel %vm427, %v424, %v426
        %v429 = vsel %vm427, %v426, %v424
        %430 = vrot.lane.b32.xlu0 %v411, 19
        %v431 = vpop.permute.xlu0 %430
        %432 = vrot.lane.b32.xlu0 %v412, 19
        %v433 = vpop.permute.xlu0 %432
        %vm434 = vcmp.lt.s32.totalorder %v419, 19
        %v435 = vsel %vm434, %v431, %v433
        %v436 = vsel %vm434, %v433, %v431
        %437 = vrot.lane.b32.xlu0 %v411, 1
        %v438 = vpop.permute.xlu0 %437
        %439 = vrot.lane.b32.xlu0 %v412, 1
        %v440 = vpop.permute.xlu0 %439
        %vm441 = vcmp.lt.s32.totalorder %v419, 1
        %v442 = vsel %vm441, %v438, %v440
        %v443 = vsel %vm441, %v440, %v438
        %444 = vrot.lane.b32.xlu0 %v411, 127
        %v445 = vpop.permute.xlu0 %444
        %446 = vrot.lane.b32.xlu0 %v412, 127
        %v447 = vpop.permute.xlu0 %446
        %vm448 = vcmp.lt.s32.totalorder %v419, 127
        %v449 = vsel %vm448, %v445, %v447
        %v450 = vsel %vm448, %v447, %v445
        %451 = vrot.lane.b32.xlu0 %v411, 109
        %v452 = vpop.permute.xlu0 %451
        %453 = vrot.lane.b32.xlu0 %v412, 109
        %v454 = vpop.permute.xlu0 %453
        %vm455 = vcmp.lt.s32.totalorder %v419, 109
        %v456 = vsel %vm455, %v452, %v454
        %v457 = vsel %vm455, %v454, %v452
        %458 = vrot.lane.b32.xlu0 %v411, 108
        %v459 = vpop.permute.xlu0 %458
        %460 = vrot.lane.b32.xlu0 %v412, 108
        %v461 = vpop.permute.xlu0 %460
        %vm462 = vcmp.lt.s32.totalorder %v419, 108
        %v463 = vsel %vm462, %v459, %v461
        %v464 = vsel %vm462, %v461, %v459
        %465 = vrot.lane.b32.xlu0 %v411, 107
        %v466 = vpop.permute.xlu0 %465
        %467 = vrot.lane.b32.xlu0 %v412, 107
        %v468 = vpop.permute.xlu0 %467
        %vm469 = vcmp.lt.s32.totalorder %v419, 107
        %v470 = vsel %vm469, %v466, %v468
        %v471 = vsel %vm469, %v468, %v466
        %v472 = vld [vmem:[%s1] sm:$0xff]
        %vm473 = vcmask 588800
        %v475 = vsel %vm473, %v472, 0
        %477 = vmatprep.subr.mxu0 %v421
        %478 = vmatpush1.msra.mxu0 %v422
        %479 = vmatprep.subr.mxu0 %v428
        %480 = vmatpush1.msra.mxu0 %v429
        %481 = vmatprep.subr.mxu0 %v435
        %482 = vmatpush1.msra.mxu0 %v436
        %483 = vmatprep.subr.mxu0 %v442
        %484 = vmatpush1.msra.mxu0 %v443
        %485 = vmatprep.subr.mxu0 %v412
        %486 = vmatpush1.msra.mxu0 %v411
        %487 = vmatprep.subr.mxu0 %v450
        %488 = vmatpush1.msra.mxu0 %v449
        %489 = vmatprep.subr.mxu0 %v457
        %490 = vmatpush1.msra.mxu0 %v456
        %491 = vmatprep.subr.mxu0 %v464
        %492 = vmatpush1.msra.mxu0 %v463
        %493 = vmatprep.subr.mxu0 %v471
        %494 = vmatpush1.msra.mxu0 %v470
        %495 = vmatprep.subr.mxu0 0.0
        %496 = vmatpush1.msra.mxu0 0.0
        %497 = vmatprep.subr.mxu0 0.0
        %498 = vmatpush1.msra.mxu0 0.0
        %499 = vmatprep.subr.mxu0 0.0
        %500 = vmatpush1.msra.mxu0 0.0
        %501 = vmatprep.subr.mxu0 0.0
        %502 = vmatpush1.msra.mxu0 0.0
        %503 = vmatprep.subr.mxu0 0.0
        %504 = vmatpush1.msra.mxu0 0.0
        %505 = vmatprep.subr.mxu0 0.0
        %506 = vmatpush1.msra.mxu0 0.0
        %507 = vmatprep.subr.mxu0 0.0
        %508 = vmatpush1.msra.mxu0 0.0
        %509 = vmatprep.subr.mxu0 0.0
        %510 = vmatpush1.msra.mxu0 0.0
        %511 = vmatprep.subr.mxu0 0.0
        %512 = vmatpush1.msra.mxu0 0.0
        %513 = vmatprep.subr.mxu0 0.0
        %514 = vmatpush1.msra.mxu0 0.0
        %515 = vmatprep.subr.mxu0 0.0
        %516 = vmatpush1.msra.mxu0 0.0
        %517 = vmatprep.subr.mxu0 0.0
        %518 = vmatpush1.msra.mxu0 0.0
        %519 = vmatprep.subr.mxu0 0.0
        %520 = vmatpush1.msra.mxu0 0.0
        %521 = vmatprep.subr.mxu0 0.0
        %522 = vmatpush1.msra.mxu0 0.0
        %523 = vmatprep.subr.mxu0 0.0
        %524 = vmatpush1.msra.mxu0 0.0
        %525 = vmatprep.subr.mxu0 0.0
        %526 = vmatpush1.msra.mxu0 0.0
        %527 = vmatprep.subr.mxu0 0.0
        %528 = vmatpush1.msra.mxu0 0.0
        %529 = vmatprep.subr.mxu0 0.0
        %530 = vmatpush1.msra.mxu0 0.0
        %531 = vmatprep.subr.mxu0 0.0
        %532 = vmatpush1.msra.mxu0 0.0
        %533 = vmatprep.subr.mxu0 0.0
        %534 = vmatpush1.msra.mxu0 0.0
        %535 = vmatprep.subr.mxu0 0.0
        %536 = vmatpush1.msra.mxu0 0.0
        %537 = vmatprep.subr.mxu0 0.0
        %538 = vmatpush1.msra.mxu0 0.0
        %539 = vmatprep.subr.mxu0 0.0
        %540 = vmatpush1.msra.mxu0 0.0
        %541 = vmatprep.mubr.f32.mxu0 0.0
        %542 = vmatmul.mubr.f32.gmra.mrb[0].mxu0 %v475
        %v543 = vpop.f32.mrb[0].mxu0
        %v544 = vadd.f32 0.0, %v543
        %v545 = vpop.f32.mrb[0].mxu0
        %v546 = vadd.f32 0.0, %v545
        %547 = vdwg.mxu0
        %v548 = vld [vmem:[%s2] sm:$0xff]
        %550 = vset.pattern.permute.xlu0 0
        %551 = vperm.xlu0 %550, %v548
        %v552 = vpop.permute.xlu0 %551
        %v554 = vmul.f32 %v544, %v552
        %v555 = vmul.f32 %v546, %v552
        %v556 = vld [vmem:[%s3] sm:$0xff]
        %558 = vset.pattern.permute.xlu0 0
        %559 = vperm.xlu0 %558, %v556
        %v560 = vpop.permute.xlu0 %559
        %v562 = vadd.f32 %v554, %v560
        %v563 = vadd.f32 %v555, %v560
        %v564 = vmax.f32 %v562, 0.0
        %v565 = vmax.f32 %v563, 0.0
        %v567 = vlaneseq
        %v568 = vshrl.u32 %v567, 7
        %v569 = vsub.s32 0, %v568
        %v570 = vrot.slane %v413, %v569
        %v571 = vlaneseq
        %v572 = vshrl.u32 %v571, 7
        %v573 = vsub.s32 1, %v572
        %v574 = vrot.slane %v413, %v573
        %v577 = vmul.f32 %v564, %v570
        %v578 = vmul.f32 %v565, %v574
        %579 = vrot.lane.b32.xlu0 %v577, 21
        %v580 = vpop.permute.xlu0 %579
        %581 = vrot.lane.b32.xlu0 %v578, 21
        %v582 = vpop.permute.xlu0 %581
        %v583 = vsel %vm420, %v580, %v582
        %v584 = vsel %vm420, %v582, %v580
        %585 = vrot.lane.b32.xlu0 %v577, 20
        %v586 = vpop.permute.xlu0 %585
        %587 = vrot.lane.b32.xlu0 %v578, 20
        %v588 = vpop.permute.xlu0 %587
        %v589 = vsel %vm427, %v586, %v588
        %v590 = vsel %vm427, %v588, %v586
        %591 = vrot.lane.b32.xlu0 %v577, 19
        %v592 = vpop.permute.xlu0 %591
        %593 = vrot.lane.b32.xlu0 %v578, 19
        %v594 = vpop.permute.xlu0 %593
        %v595 = vsel %vm434, %v592, %v594
        %v596 = vsel %vm434, %v594, %v592
        %597 = vrot.lane.b32.xlu0 %v577, 1
        %v598 = vpop.permute.xlu0 %597
        %599 = vrot.lane.b32.xlu0 %v578, 1
        %v600 = vpop.permute.xlu0 %599
        %v601 = vsel %vm441, %v598, %v600
        %v602 = vsel %vm441, %v600, %v598
        %603 = vrot.lane.b32.xlu0 %v577, 127
        %v604 = vpop.permute.xlu0 %603
        %605 = vrot.lane.b32.xlu0 %v578, 127
        %v606 = vpop.permute.xlu0 %605
        %v607 = vsel %vm448, %v604, %v606
        %v608 = vsel %vm448, %v606, %v604
        %609 = vrot.lane.b32.xlu0 %v577, 109
        %v610 = vpop.permute.xlu0 %609
        %611 = vrot.lane.b32.xlu0 %v578, 109
        %v612 = vpop.permute.xlu0 %611
        %v613 = vsel %vm455, %v610, %v612
        %v614 = vsel %vm455, %v612, %v610
        %615 = vrot.lane.b32.xlu0 %v577, 108
        %v616 = vpop.permute.xlu0 %615
        %617 = vrot.lane.b32.xlu0 %v578, 108
        %v618 = vpop.permute.xlu0 %617
        %v619 = vsel %vm462, %v616, %v618
        %v620 = vsel %vm462, %v618, %v616
        %621 = vrot.lane.b32.xlu0 %v577, 107
        %v622 = vpop.permute.xlu0 %621
        %623 = vrot.lane.b32.xlu0 %v578, 107
        %v624 = vpop.permute.xlu0 %623
        %v625 = vsel %vm469, %v622, %v624
        %v626 = vsel %vm469, %v624, %v622
        %v627 = vld [vmem:[%s4] sm:$0xff]
        %v629 = vsel %vm473, %v627, 0
        %631 = vmatprep.subr.mxu0 %v583
        %632 = vmatpush1.msra.mxu0 %v584
        %633 = vmatprep.subr.mxu0 %v589
        %634 = vmatpush1.msra.mxu0 %v590
        %635 = vmatprep.subr.mxu0 %v595
        %636 = vmatpush1.msra.mxu0 %v596
        %637 = vmatprep.subr.mxu0 %v601
        %638 = vmatpush1.msra.mxu0 %v602
        %639 = vmatprep.subr.mxu0 %v578
        %640 = vmatpush1.msra.mxu0 %v577
        %641 = vmatprep.subr.mxu0 %v608
        %642 = vmatpush1.msra.mxu0 %v607
        %643 = vmatprep.subr.mxu0 %v614
        %644 = vmatpush1.msra.mxu0 %v613
        %645 = vmatprep.subr.mxu0 %v620
        %646 = vmatpush1.msra.mxu0 %v619
        %647 = vmatprep.subr.mxu0 %v626
        %648 = vmatpush1.msra.mxu0 %v625
        %649 = vmatprep.subr.mxu0 0.0
        %650 = vmatpush1.msra.mxu0 0.0
        %651 = vmatprep.subr.mxu0 0.0
        %652 = vmatpush1.msra.mxu0 0.0
        %653 = vmatprep.subr.mxu0 0.0
        %654 = vmatpush1.msra.mxu0 0.0
        %655 = vmatprep.subr.mxu0 0.0
        %656 = vmatpush1.msra.mxu0 0.0
        %657 = vmatprep.subr.mxu0 0.0
        %658 = vmatpush1.msra.mxu0 0.0
        %659 = vmatprep.subr.mxu0 0.0
        %660 = vmatpush1.msra.mxu0 0.0
        %661 = vmatprep.subr.mxu0 0.0
        %662 = vmatpush1.msra.mxu0 0.0
        %663 = vmatprep.subr.mxu0 0.0
        %664 = vmatpush1.msra.mxu0 0.0
        %665 = vmatprep.subr.mxu0 0.0
        %666 = vmatpush1.msra.mxu0 0.0
        %667 = vmatprep.subr.mxu0 0.0
        %668 = vmatpush1.msra.mxu0 0.0
        %669 = vmatprep.subr.mxu0 0.0
        %670 = vmatpush1.msra.mxu0 0.0
        %671 = vmatprep.subr.mxu0 0.0
        %672 = vmatpush1.msra.mxu0 0.0
        %673 = vmatprep.subr.mxu0 0.0
        %674 = vmatpush1.msra.mxu0 0.0
        %675 = vmatprep.subr.mxu0 0.0
        %676 = vmatpush1.msra.mxu0 0.0
        %677 = vmatprep.subr.mxu0 0.0
        %678 = vmatpush1.msra.mxu0 0.0
        %679 = vmatprep.subr.mxu0 0.0
        %680 = vmatpush1.msra.mxu0 0.0
        %681 = vmatprep.subr.mxu0 0.0
        %682 = vmatpush1.msra.mxu0 0.0
        %683 = vmatprep.subr.mxu0 0.0
        %684 = vmatpush1.msra.mxu0 0.0
        %685 = vmatprep.subr.mxu0 0.0
        %686 = vmatpush1.msra.mxu0 0.0
        %687 = vmatprep.subr.mxu0 0.0
        %688 = vmatpush1.msra.mxu0 0.0
        %689 = vmatprep.subr.mxu0 0.0
        %690 = vmatpush1.msra.mxu0 0.0
        %691 = vmatprep.subr.mxu0 0.0
        %692 = vmatpush1.msra.mxu0 0.0
        %693 = vmatprep.subr.mxu0 0.0
        %694 = vmatpush1.msra.mxu0 0.0
        %695 = vmatprep.mubr.f32.mxu0 0.0
        %696 = vmatmul.mubr.f32.gmra.mrb[0].mxu0 %v629
        %v697 = vpop.f32.mrb[0].mxu0
        %v698 = vadd.f32 0.0, %v697
        %v699 = vpop.f32.mrb[0].mxu0
        %v700 = vadd.f32 0.0, %v699
        %701 = vdwg.mxu0
        %v702 = vld [vmem:[%s5] sm:$0xff]
        %704 = vset.pattern.permute.xlu0 0
        %705 = vperm.xlu0 %704, %v702
        %v706 = vpop.permute.xlu0 %705
        %v708 = vmul.f32 %v698, %v706
        %v709 = vmul.f32 %v700, %v706
        %v710 = vld [vmem:[%s6] sm:$0xff]
        %712 = vset.pattern.permute.xlu0 0
        %713 = vperm.xlu0 %712, %v710
        %v714 = vpop.permute.xlu0 %713
        %v716 = vadd.f32 %v708, %v714
        %v717 = vadd.f32 %v709, %v714
        %v718 = vld [vmem:[%s8] sm:$0xff]
        %v719 = vld [vmem:[%s9] sm:$0xff]
        %721 = vset.pattern.permute.xlu0 0
        %722 = vperm.xlu0 %721, %v719
        %v723 = vpop.permute.xlu0 %722
        %vm725 = vcmask 64512
        %v727 = vsel %vm725, %v718, 0
        %729 = vmatprep.subr.mxu0 %v412
        %730 = vmatpush1.msra.mxu0 %v411
        %731 = vmatprep.subr.mxu0 0.0
        %732 = vmatpush1.msra.mxu0 0.0
        %733 = vmatprep.subr.mxu0 0.0
        %734 = vmatpush1.msra.mxu0 0.0
        %735 = vmatprep.subr.mxu0 0.0
        %736 = vmatpush1.msra.mxu0 0.0
        %737 = vmatprep.subr.mxu0 0.0
        %738 = vmatpush1.msra.mxu0 0.0
        %739 = vmatprep.subr.mxu0 0.0
        %740 = vmatpush1.msra.mxu0 0.0
        %741 = vmatprep.subr.mxu0 0.0
        %742 = vmatpush1.msra.mxu0 0.0
        %743 = vmatprep.subr.mxu0 0.0
        %744 = vmatpush1.msra.mxu0 0.0
        %745 = vmatprep.subr.mxu0 0.0
        %746 = vmatpush1.msra.mxu0 0.0
        %747 = vmatprep.subr.mxu0 0.0
        %748 = vmatpush1.msra.mxu0 0.0
        %749 = vmatprep.subr.mxu0 0.0
        %750 = vmatpush1.msra.mxu0 0.0
        %751 = vmatprep.subr.mxu0 0.0
        %752 = vmatpush1.msra.mxu0 0.0
        %753 = vmatprep.subr.mxu0 0.0
        %754 = vmatpush1.msra.mxu0 0.0
        %755 = vmatprep.subr.mxu0 0.0
        %756 = vmatpush1.msra.mxu0 0.0
        %757 = vmatprep.subr.mxu0 0.0
        %758 = vmatpush1.msra.mxu0 0.0
        %759 = vmatprep.subr.mxu0 0.0
        %760 = vmatpush1.msra.mxu0 0.0
        %761 = vmatprep.subr.mxu0 0.0
        %762 = vmatpush1.msra.mxu0 0.0
        %763 = vmatprep.subr.mxu0 0.0
        %764 = vmatpush1.msra.mxu0 0.0
        %765 = vmatprep.subr.mxu0 0.0
        %766 = vmatpush1.msra.mxu0 0.0
        %767 = vmatprep.subr.mxu0 0.0
        %768 = vmatpush1.msra.mxu0 0.0
        %769 = vmatprep.subr.mxu0 0.0
        %770 = vmatpush1.msra.mxu0 0.0
        %771 = vmatprep.subr.mxu0 0.0
        %772 = vmatpush1.msra.mxu0 0.0
        %773 = vmatprep.subr.mxu0 0.0
        %774 = vmatpush1.msra.mxu0 0.0
        %775 = vmatprep.subr.mxu0 0.0
        %776 = vmatpush1.msra.mxu0 0.0
        %777 = vmatprep.subr.mxu0 0.0
        %778 = vmatpush1.msra.mxu0 0.0
        %779 = vmatprep.subr.mxu0 0.0
        %780 = vmatpush1.msra.mxu0 0.0
        %781 = vmatprep.subr.mxu0 0.0
        %782 = vmatpush1.msra.mxu0 0.0
        %783 = vmatprep.subr.mxu0 0.0
        %784 = vmatpush1.msra.mxu0 0.0
        %785 = vmatprep.subr.mxu0 0.0
        %786 = vmatpush1.msra.mxu0 0.0
        %787 = vmatprep.subr.mxu0 0.0
        %788 = vmatpush1.msra.mxu0 0.0
        %789 = vmatprep.subr.mxu0 0.0
        %790 = vmatpush1.msra.mxu0 0.0
        %791 = vmatprep.subr.mxu0 0.0
        %792 = vmatpush1.msra.mxu0 0.0
        %793 = vmatprep.mubr.f32.mxu0 0.0
        %794 = vmatmul.mubr.f32.gmra.mrb[0].mxu0 %v727
        %v795 = vpop.f32.mrb[0].mxu0
        %v796 = vadd.f32 %v723, %v795
        %v797 = vpop.f32.mrb[0].mxu0
        %v798 = vadd.f32 %v723, %v797
        %799 = vdwg.mxu0
        %v800 = vadd.f32 %v716, %v796
        %v801 = vadd.f32 %v717, %v798
        %v802 = vmax.f32 %v800, 0.0
        %v803 = vmax.f32 %v801, 0.0
        %804 = vst [vmem:[%s406] sm:$0xff] %v802
        %805 = vst [vmem:[%s406 + $0x8] sm:$0xff] %v803
        %s806 = sand.u32 %s271, 1
        %s807 = scalar_lea.sflag [#allocation4], %s806
        %s808 = sand.u32 %s271, 1
        %s809 = smul.addr %s808, 16
        %s810 = scalar_lea.vmem [#allocation5], %s809
        // Predicated region
        $region65: #{tpu_custom_call.1} parent=59 // pred_check
          %p811 = pneg %p281
        $region66: #{tpu_custom_call.1} parent=59 // pred_check_branch
          %813 = sbr.rel (%p811) target = $region68
        $region67: #{tpu_custom_call.1} parent=59 // pred_region
          %s815 = ssub.s32 256, 256
          %816 = vsyncadd %s807, %s815
          %s817 = smul.addr %s32, 2
          %s818 = smul.addr %s31, 8
          %s819 = sadd.s32 %s817, %s818
          %s820 = smul.addr %s819, 128
          %s821 = scalar_lea.hbm %s10, %s820
          %s823 = sshll.u32 %s810, 4
          %s824 = int_to_ptr.vmem [resolvable:$true] %s823
          %826 = dma.vmem_to_hbm [thread:$0]  %s824, 256, %s821, %s807
        $region68: #{tpu_custom_call.1} parent=59 // pred_fallthru
          _
      $region60: #{tpu_custom_call.1} parent=5 // pred_fallthru
        _
      %p827 = scmp.le.s32.totalorder 2, %s22
      // Predicated region
      $region69: #{tpu_custom_call.1} parent=5 // pred_check
        %p828 = pneg %p827
      $region70: #{tpu_custom_call.1} parent=5 // pred_check_branch
        %830 = sbr.rel (%p828) target = $region72
      $region71: #{tpu_custom_call.1} parent=5 // pred_region
        %s831 = ssub.s32 %s22, 2
        // Predicated region
        $region73: #{tpu_custom_call.1} parent=71 // pred_check
          %p832 = pneg %p287
        $region74: #{tpu_custom_call.1} parent=71 // pred_check_branch
          %834 = sbr.rel (%p832) target = $region76
        $region75: #{tpu_custom_call.1} parent=71 // pred_region
          %s835 = sand.u32 %s272, 1
          %s836 = scalar_lea.sflag [#allocation4], %s835
          %s837 = sand.u32 %s272, 1
          %s838 = smul.addr %s837, 16
          %s839 = scalar_lea.vmem [#allocation5], %s838
          %840 = dma.done %s836, 256
        $region76: #{tpu_custom_call.1} parent=71 // pred_fallthru
          _
      $region72: #{tpu_custom_call.1} parent=5 // pred_fallthru
        _
    $region6: #{tpu_custom_call.1} parent=1 // loop_footer
      %s26 = sadd.s32 1, %s22
    $region7: #{tpu_custom_call.1} parent=1 // loop_footer_branch
      %21 = sbr.rel target = $region3
    $region8: #{tpu_custom_call.1} parent=1 // loop_exit
      _
    %841 = vsyncpa [#allocation3], 1
    %s842 = scalar_lea.sflag [#allocation3], 1
    %843 = vsyncpa %s842, 1
    %844 = vsyncpa [#allocation4], 1
    %s845 = scalar_lea.sflag [#allocation4], 1
    %846 = vsyncpa %s845, 1

</llo_original>
